<compile_context>
chip_gen: v6e
topology: v6e:2x2x1
jax: 0.10.0
libtpu: 0.0.40
codegen_flags: <defaults>
</compile_context>

<pallas_src>
import functools
import jax
import jax.numpy as jnp
from jax.experimental import pallas as pl
from jax.experimental.pallas import tpu as pltpu


def _round_up(x, m):
    return (x + m - 1) // m * m


_VMEM_LIMIT = 48 * 1024 * 1024  # under v7x's 64 MiB physical VMEM per TC


# ---------------------------------------------------------------------------
# Pallas kernel A1: tiled matmul (conv) + per-tile BN statistics (BN layers)
# ---------------------------------------------------------------------------
def _matmul_stats_kernel(p_ref, w_ref, y_ref, stats_ref, acc_ref):
    k = pl.program_id(1)

    @pl.when(k == 0)
    def _():
        acc_ref[...] = jnp.zeros_like(acc_ref)

    acc_ref[...] += jnp.dot(p_ref[...], w_ref[...],
                            preferred_element_type=jnp.float32)

    @pl.when(k == pl.num_programs(1) - 1)
    def _():
        y = acc_ref[...]
        y_ref[...] = y.astype(y_ref.dtype)
        s = jnp.sum(y, axis=0, keepdims=True)         # (1, CoutP)
        ss = jnp.sum(y * y, axis=0, keepdims=True)    # (1, CoutP)
        stats_ref[...] = jnp.concatenate([s, ss], axis=0)[None, :, :]


# ---------------------------------------------------------------------------
# Pallas kernel A2: tiled matmul (conv) + bias + optional LeakyReLU (no-BN layers)
# ---------------------------------------------------------------------------
def _matmul_bias_kernel(p_ref, w_ref, b_ref, y_ref, acc_ref, *, use_act, slope):
    k = pl.program_id(1)

    @pl.when(k == 0)
    def _():
        acc_ref[...] = jnp.zeros_like(acc_ref)

    acc_ref[...] += jnp.dot(p_ref[...], w_ref[...],
                            preferred_element_type=jnp.float32)

    @pl.when(k == pl.num_programs(1) - 1)
    def _():
        y = acc_ref[...] + b_ref[...]
        if use_act:
            y = jnp.where(y >= 0, y, slope * y)
        y_ref[...] = y.astype(y_ref.dtype)


# ---------------------------------------------------------------------------
# Pallas kernel B: BatchNorm apply (precomputed scale/shift) + LeakyReLU
# ---------------------------------------------------------------------------
def _bn_act_kernel(y_ref, scale_ref, shift_ref, o_ref, *, slope):
    y = y_ref[...].astype(jnp.float32) * scale_ref[...] + shift_ref[...]
    y = jnp.where(y >= 0, y, slope * y)
    o_ref[...] = y.astype(o_ref.dtype)


# ---------------------------------------------------------------------------
# pallas_call wrappers
# ---------------------------------------------------------------------------
def _conv_matmul_bn_stats(patches, w, *, tm, tk, out_dtype):
    mp_, kp = patches.shape
    coutp = w.shape[1]
    gm, gk = mp_ // tm, kp // tk
    out_bytes = jnp.dtype(out_dtype).itemsize
    flops = 2 * mp_ * kp * coutp
    bytes_acc = patches.size * 2 + w.size * 2 + mp_ * coutp * out_bytes
    y, stats = pl.pallas_call(
        _matmul_stats_kernel,
        out_shape=(jax.ShapeDtypeStruct((mp_, coutp), out_dtype),
                   jax.ShapeDtypeStruct((gm, 2, coutp), jnp.float32)),
        grid_spec=pltpu.PrefetchScalarGridSpec(
            num_scalar_prefetch=0,
            grid=(gm, gk),
            in_specs=[pl.BlockSpec((tm, tk), lambda i, k: (i, k)),
                      pl.BlockSpec((tk, coutp), lambda i, k: (k, 0))],
            out_specs=(pl.BlockSpec((tm, coutp), lambda i, k: (i, 0)),
                       pl.BlockSpec((1, 2, coutp), lambda i, k: (i, 0, 0))),
            scratch_shapes=[pltpu.VMEM((tm, coutp), jnp.float32)]),
        compiler_params=pltpu.CompilerParams(
            dimension_semantics=("parallel", "arbitrary"),
            vmem_limit_bytes=_VMEM_LIMIT),
        cost_estimate=pl.CostEstimate(flops=flops, transcendentals=0,
                                      bytes_accessed=bytes_acc),
    )(patches, w)
    return y, stats


def _conv_matmul_bias(patches, w, b, *, tm, tk, use_act, out_dtype, slope=0.2):
    mp_, kp = patches.shape
    coutp = w.shape[1]
    gm, gk = mp_ // tm, kp // tk
    out_bytes = jnp.dtype(out_dtype).itemsize
    kern = functools.partial(_matmul_bias_kernel, use_act=use_act, slope=slope)
    flops = 2 * mp_ * kp * coutp
    bytes_acc = patches.size * 2 + w.size * 2 + mp_ * coutp * out_bytes
    return pl.pallas_call(
        kern,
        out_shape=jax.ShapeDtypeStruct((mp_, coutp), out_dtype),
        grid_spec=pltpu.PrefetchScalarGridSpec(
            num_scalar_prefetch=0,
            grid=(gm, gk),
            in_specs=[pl.BlockSpec((tm, tk), lambda i, k: (i, k)),
                      pl.BlockSpec((tk, coutp), lambda i, k: (k, 0)),
                      pl.BlockSpec((1, coutp), lambda i, k: (0, 0))],
            out_specs=pl.BlockSpec((tm, coutp), lambda i, k: (i, 0)),
            scratch_shapes=[pltpu.VMEM((tm, coutp), jnp.float32)]),
        compiler_params=pltpu.CompilerParams(
            dimension_semantics=("parallel", "arbitrary"),
            vmem_limit_bytes=_VMEM_LIMIT),
        cost_estimate=pl.CostEstimate(flops=flops, transcendentals=0,
                                      bytes_accessed=bytes_acc),
    )(patches, w, b)


def _bn_act(y, scale, shift, *, tm, out_dtype, slope=0.2):
    mp_, coutp = y.shape
    gm = mp_ // tm
    kern = functools.partial(_bn_act_kernel, slope=slope)
    in_bytes = y.dtype.itemsize
    out_bytes = jnp.dtype(out_dtype).itemsize
    return pl.pallas_call(
        kern,
        out_shape=jax.ShapeDtypeStruct((mp_, coutp), out_dtype),
        grid_spec=pltpu.PrefetchScalarGridSpec(
            num_scalar_prefetch=0,
            grid=(gm,),
            in_specs=[pl.BlockSpec((tm, coutp), lambda i: (i, 0)),
                      pl.BlockSpec((1, coutp), lambda i: (0, 0)),
                      pl.BlockSpec((1, coutp), lambda i: (0, 0))],
            out_specs=pl.BlockSpec((tm, coutp), lambda i: (i, 0))),
        compiler_params=pltpu.CompilerParams(
            dimension_semantics=("parallel",),
            vmem_limit_bytes=_VMEM_LIMIT),
        cost_estimate=pl.CostEstimate(
            flops=3 * mp_ * coutp, transcendentals=0,
            bytes_accessed=mp_ * coutp * (in_bytes + out_bytes)),
    )(y, scale, shift)


# ---------------------------------------------------------------------------
# Plain-JAX glue: zero-pad + im2col patch extraction (data rearrangement only)
# ---------------------------------------------------------------------------
def im2col(x_nhwc, k, stride, pad, *, out_dtype=jnp.bfloat16):
    x = jnp.pad(x_nhwc, ((0, 0), (pad, pad), (pad, pad), (0, 0)))
    n, hp, wp, c = x.shape
    oh = (hp - k) // stride + 1
    ow = (wp - k) // stride + 1
    cols = []
    for kh in range(k):
        for kw in range(k):
            cols.append(x[:, kh:kh + stride * oh:stride,
                          kw:kw + stride * ow:stride, :])
    patches = jnp.stack(cols, axis=3)                    # (N, OH, OW, k*k, C)
    return patches.reshape(n * oh * ow, k * k * c).astype(out_dtype), (n, oh, ow)


def _pick_tiles(m, kdim):
    if m >= 4096:
        tm = 512
    elif m >= 256:
        tm = 256
    else:
        tm = _round_up(m, 8)
    mp_ = _round_up(m, tm)
    kp = _round_up(kdim, 128)
    tk = min(512, kp)
    while kp % tk != 0:
        tk -= 128
    return tm, mp_, tk, kp


# ---------------------------------------------------------------------------
# Parameter construction (mirrors nn.Module __init__ shapes; lane-padded)
# ---------------------------------------------------------------------------
def init_params(key, input_nc, ndf=64, n_layers=3):
    # (cin, cout, stride, use_bias, use_bn, use_act) mirroring the PyTorch model list.
    cfgs = [(input_nc, ndf, 2, True, False, True)]
    nf_mult = 1
    for n in range(1, n_layers):
        nf_prev, nf_mult = nf_mult, min(2 ** n, 8)
        cfgs.append((ndf * nf_prev, ndf * nf_mult, 2, False, True, True))
    nf_prev, nf_mult = nf_mult, min(2 ** n_layers, 8)
    cfgs.append((ndf * nf_prev, ndf * nf_mult, 1, False, True, True))
    cfgs.append((ndf * nf_mult, 1, 1, True, False, False))

    params = []
    for cin, cout, stride, ub, ubn, uact in cfgs:
        key, kw_, kb_ = jax.random.split(key, 3)
        k_dim = 4 * 4 * cin
        kp = _round_up(k_dim, 128)
        coutp = _round_up(cout, 128)
        # PyTorch Conv2d weight is OIHW; convert to (KH*KW*Cin, Cout) matching im2col.
        w_oihw = jax.random.normal(kw_, (cout, cin, 4, 4), jnp.float32) * 0.02
        w = jnp.transpose(w_oihw, (2, 3, 1, 0)).reshape(k_dim, cout)
        # Zero-pad K rows and Cout columns to lane-dense multiples of 128; cast to bf16.
        w = jnp.pad(w, ((0, kp - k_dim), (0, coutp - cout))).astype(jnp.bfloat16)
        b = (jax.random.normal(kb_, (1, cout), jnp.float32) * 0.02
             if ub else jnp.zeros((1, cout), jnp.float32))
        b = jnp.pad(b, ((0, 0), (0, coutp - cout)))
        gamma = jnp.pad(jnp.ones((1, cout), jnp.float32), ((0, 0), (0, coutp - cout)))
        beta = jnp.zeros((1, coutp), jnp.float32)
        params.append(dict(w=w, b=b, g=gamma, beta=beta, stride=stride,
                           cin=cin, cout=cout, k_dim=k_dim,
                           use_bias=ub, use_bn=ubn, use_act=uact))
    return params


# ---------------------------------------------------------------------------
# Forward pass (sequential layers; tiled Pallas kernels per layer)
# ---------------------------------------------------------------------------
def nlayer_discriminator(x_nchw, params, eps=1e-5):
    x = jnp.transpose(x_nchw, (0, 2, 3, 1)).astype(jnp.float32)   # NCHW -> NHWC
    n_layers = len(params)
    for li, p in enumerate(params):
        is_last = li == n_layers - 1
        # Intermediate activations stay bf16 (next im2col casts to bf16 anyway);
        # the final logits layer is stored in f32.
        out_dtype = jnp.float32 if is_last else jnp.bfloat16

        patches, (n, oh, ow) = im2col(x, 4, p['stride'], 1)
        m = n * oh * ow
        tm, mp_, tk, kp = _pick_tiles(m, p['k_dim'])
        # Zero-pad M rows and K cols to tile multiples (zero rows contribute 0 to BN stats).
        patches = jnp.pad(patches, ((0, mp_ - m), (0, kp - p['k_dim'])))

        if p['use_bn']:
            y, stats = _conv_matmul_bn_stats(patches, p['w'], tm=tm, tk=tk,
                                             out_dtype=out_dtype)
            tot = jnp.sum(stats, axis=0)                 # (2, CoutP): sum, sum-of-squares
            mean = tot[0:1, :] / m
            var = jnp.maximum(tot[1:2, :] / m - mean * mean, 0.0)  # biased (training) var
            scale = p['g'] * jax.lax.rsqrt(var + eps)
            shift = p['beta'] - mean * scale
            y = _bn_act(y, scale, shift, tm=tm, out_dtype=out_dtype)
        else:
            y = _conv_matmul_bias(patches, p['w'], p['b'], tm=tm, tk=tk,
                                  use_act=p['use_act'], out_dtype=out_dtype)

        # Strip M / Cout padding; back to NHWC for the next layer.
        x = y[:m, :p['cout']].reshape(n, oh, ow, p['cout'])
    return jnp.transpose(x, (0, 3, 1, 2))                # NHWC -> NCHW


if __name__ == "__main__":
    key = jax.random.PRNGKey(0)
    key, kx = jax.random.split(key)

    # Small shapes: batch=2, input_nc=4, spatial=32 (spatial 16 would shrink below the
    # 4x4 receptive field of the last conv), ndf=8, n_layers=3.
    input_nc, ndf, n_layers = 4, 8, 3
    x = jax.random.normal(kx, (2, input_nc, 32, 32), jnp.float32)

    params = init_params(key, input_nc, ndf=ndf, n_layers=n_layers)
    out = nlayer_discriminator(x, params)
    out = jax.block_until_ready(out)

    assert out.shape == (2, 1, 2, 2), out.shape           # PatchGAN logits map (NCHW)
    assert out.dtype == jnp.float32
    print("KERNEL_OK")
</pallas_src>

<mosaic_0001>
module attributes {stable_mosaic.version = 11 : i64} {
  func.func @_matmul_bias_kernel(%arg0: i32, %arg1: i32, %arg2: memref<256x128xbf16, #tpu.memory_space<vmem>>, %arg3: memref<128x128xbf16, #tpu.memory_space<vmem>>, %arg4: memref<1x128xf32, #tpu.memory_space<vmem>>, %arg5: memref<256x128xbf16, #tpu.memory_space<vmem>>, %arg6: memref<256x128xf32, #tpu.memory_space<vmem>>) attributes {dimension_semantics = [#tpu.dimension_semantics<parallel>, #tpu.dimension_semantics<arbitrary>], iteration_bounds = array<i64: 2, 1>, scalar_prefetch = 0 : i64, scratch_operands = 1 : i64, tpu.core_type = #tpu.core_type<tc>, window_params = [{transform_indices = @transform_0, window_bounds = array<i64: 256, 128>}, {transform_indices = @transform_1, window_bounds = array<i64: 128, 128>}, {pipeline_mode = #tpu.pipeline_mode<synchronous>, transform_indices = @transform_2, window_bounds = array<i64: 1, 128>}, {transform_indices = @transform_3, window_bounds = array<i64: 256, 128>}]} {
    %c0_i32 = arith.constant 0 : i32
    %0 = arith.cmpi eq, %arg1, %c0_i32 : i32
    %1 = arith.extui %0 : i1 to i32
    %c0_i32_0 = arith.constant 0 : i32
    %2 = arith.cmpi ne, %1, %c0_i32_0 : i32
    scf.if %2 {
      %cst_10 = arith.constant 0.000000e+00 : f32
      %12 = vector.broadcast %cst_10 : f32 to vector<256x128xf32>
      %c0_11 = arith.constant 0 : index
      %c0_12 = arith.constant 0 : index
      %13 = vector.load %arg6[%c0_11, %c0_12] : memref<256x128xf32, #tpu.memory_space<vmem>>, vector<256x128xf32>
      tpu.vector_store %arg6[%c0_11, %c0_12], %12 {strides = array<i32>} : memref<256x128xf32, #tpu.memory_space<vmem>>, vector<256x128xf32>,
    } else {
    }
    %c0 = arith.constant 0 : index
    %c0_1 = arith.constant 0 : index
    %3 = vector.load %arg6[%c0, %c0_1] : memref<256x128xf32, #tpu.memory_space<vmem>>, vector<256x128xf32>
    %c0_2 = arith.constant 0 : index
    %c0_3 = arith.constant 0 : index
    %4 = vector.load %arg2[%c0_2, %c0_3] : memref<256x128xbf16, #tpu.memory_space<vmem>>, vector<256x128xbf16>
    %c0_4 = arith.constant 0 : index
    %c0_5 = arith.constant 0 : index
    %5 = vector.load %arg3[%c0_4, %c0_5] : memref<128x128xbf16, #tpu.memory_space<vmem>>, vector<128x128xbf16>
    %cst = arith.constant dense<0.000000e+00> : vector<256x128xf32>
    %6 = tpu.matmul %4, %5, %cst {dimension_numbers = #tpu.dot_dimension_numbers<[1], [0], [0], [1], [0, 0, 1, 1], [], []>} : vector<256x128xbf16>, vector<128x128xbf16>, vector<256x128xf32> -> vector<256x128xf32>
    %7 = arith.addf %3, %6 : vector<256x128xf32>
    %c0_6 = arith.constant 0 : index
    %c0_7 = arith.constant 0 : index
    %8 = vector.load %arg6[%c0_6, %c0_7] : memref<256x128xf32, #tpu.memory_space<vmem>>, vector<256x128xf32>
    tpu.vector_store %arg6[%c0_6, %c0_7], %7 {strides = array<i32>} : memref<256x128xf32, #tpu.memory_space<vmem>>, vector<256x128xf32>,
    %c0_i32_8 = arith.constant 0 : i32
    %9 = arith.cmpi eq, %arg1, %c0_i32_8 : i32
    %10 = arith.extui %9 : i1 to i32
    %c0_i32_9 = arith.constant 0 : i32
    %11 = arith.cmpi ne, %10, %c0_i32_9 : i32
    scf.if %11 {
      %c0_10 = arith.constant 0 : index
      %c0_11 = arith.constant 0 : index
      %12 = vector.load %arg6[%c0_10, %c0_11] : memref<256x128xf32, #tpu.memory_space<vmem>>, vector<256x128xf32>
      %c0_12 = arith.constant 0 : index
      %c0_13 = arith.constant 0 : index
      %13 = vector.load %arg4[%c0_12, %c0_13] : memref<1x128xf32, #tpu.memory_space<vmem>>, vector<1x128xf32>
      %14 = vector.broadcast %13 : vector<1x128xf32> to vector<256x128xf32>
      %15 = arith.addf %12, %14 : vector<256x128xf32>
      %cst_14 = arith.constant 0.000000e+00 : f32
      %16 = vector.broadcast %cst_14 : f32 to vector<256x128xf32>
      %17 = arith.cmpf oge, %15, %16 : vector<256x128xf32>
      %cst_15 = arith.constant 2.000000e-01 : f32
      %18 = vector.broadcast %cst_15 : f32 to vector<256x128xf32>
      %19 = arith.mulf %18, %15 : vector<256x128xf32>
      %20 = arith.select %17, %15, %19 : vector<256x128xi1>, vector<256x128xf32>
      %21 = arith.truncf %20 : vector<256x128xf32> to vector<256x128xbf16>
      %c0_16 = arith.constant 0 : index
      %c0_17 = arith.constant 0 : index
      %22 = vector.load %arg5[%c0_16, %c0_17] : memref<256x128xbf16, #tpu.memory_space<vmem>>, vector<256x128xbf16>
      tpu.vector_store %arg5[%c0_16, %c0_17], %21 {strides = array<i32>} : memref<256x128xbf16, #tpu.memory_space<vmem>>, vector<256x128xbf16>,
    } else {
    }
    return
  }
  func.func @transform_0(%arg0: i32, %arg1: i32) -> (i32, i32) {
    %c0_i32 = arith.constant 0 : i32
    return %arg0, %arg1 : i32, i32
  }
  func.func @transform_1(%arg0: i32, %arg1: i32) -> (i32, i32) {
    %c0_i32 = arith.constant 0 : i32
    %c0_i32_0 = arith.constant 0 : i32
    return %arg1, %c0_i32 : i32, i32
  }
  func.func @transform_2(%arg0: i32, %arg1: i32) -> (i32, i32) {
    %c0_i32 = arith.constant 0 : i32
    %c0_i32_0 = arith.constant 0 : i32
    %c0_i32_1 = arith.constant 0 : i32
    return %c0_i32, %c0_i32_0 : i32, i32
  }
  func.func @transform_3(%arg0: i32, %arg1: i32) -> (i32, i32) {
    %c0_i32 = arith.constant 0 : i32
    %c0_i32_0 = arith.constant 0 : i32
    return %arg0, %c0_i32 : i32, i32
  }
}

</mosaic_0001>

<llo_original>
// kernel: tpu_custom_call.1
$region0: #{tpu_custom_call.1}
  #allocation0 [shape = 'u32[]', space=smem, size = 0x4, offset = 0x4, fixed_abs, tag = 'smem constant byte address 0x4 - core index']
  #allocation1 [shape = 'u32[144,128]{1,0:T(1,128)}', space=vmem, size = 0x12000, scoped, tag = 'internal scratch']
  #allocation2 [shape = 'f32[256,128]{1,0:T(8,128)}', space=vmem, size = 0x20000, scoped, tag = 'scratch operand']
  %s0 = inlined_call_operand.hbm [shape: bf16[512,128], index: 0, kind: input, shape index: {}]
  %s1 = inlined_call_operand.hbm [shape: bf16[128,128], index: 1, kind: input, shape index: {}]
  %s2 = inlined_call_operand.vmem [shape: f32[1,128], index: 2, kind: input, shape index: {}]
  %s3 = inlined_call_operand.hbm [shape: bf16[512,128], index: 3, kind: output, shape index: {}]
  %s4 = sld [smem:[#allocation0]]
  $region61: #{tpu_custom_call.1} parent=0
    _
  %s6 = ssub.s32 1, %s4
  %s7 = scalar_select 0, %s6, %s4
  $region1: #{tpu_custom_call.1} parent=0
    #allocation3 [shape = 'u8[131072]{0}', space=vmem, size = 0x20000, scoped, tag = 'input window, operand 0']
    #allocation4 [shape = 's32[2]{0}', space=sflag, size = 0x8, scoped, tag = 'scoped memory for tpu_custom_call.1']
    #allocation5 [shape = 's32[2]{0}', space=sflag, size = 0x8, scoped, tag = 'scoped memory for tpu_custom_call.1']
    #allocation6 [shape = 'u8[32768]{0}', space=vmem, size = 0x8000, scoped, tag = 'input window, operand 1, single buffered']
    #allocation7 [shape = 's32[1]{0}', space=sflag, size = 0x4, scoped, tag = 'scoped memory for tpu_custom_call.1']
    #allocation8 [shape = 'u8[131072]{0}', space=vmem, size = 0x20000, scoped, tag = 'output window, operand 0']
    %8 = vsyncpa [#allocation4], 0
    %s9 = scalar_lea.sflag [#allocation4], 1
    %10 = vsyncpa %s9, 0
    %11 = vsyncpa [#allocation7], 0
    %12 = vsyncpa [#allocation5], 0
    %s13 = scalar_lea.sflag [#allocation5], 1
    %14 = vsyncpa %s13, 0
    loop: start=0, step=1, limit=4
    $region2: #{tpu_custom_call.1} parent=1 // loop_pre_header
      _
    $region3: #{tpu_custom_call.1} parent=1 // loop_header
      %s16 = sphi 0, %s20
      %p17 = scmp.ge.s32.totalorder %s16, 4
      %s23 = sphi 0, %s35
      %s24 = sphi 0, %s31
      %s25 = sphi 0, %s23
      %s26 = sphi 0, %s24
      %s27 = sphi 0, %s25
      %s28 = sphi 0, %s26
      %s40 = sphi 0, %s42
      %s43 = sphi 0, %s40
      %s44 = sphi 0, %s43
      %s60 = sphi 0, %s44
      %s66 = sphi 0, %s68
      %s69 = sphi 0, %s66
      %s70 = sphi 0, %s69
      %s86 = sphi 0, %s70
      %s90 = sphi 0, %s90
      %s92 = sphi 0, %s90
      %s93 = sphi 0, %s92
      %s107 = sphi 0, %s93
      %s113 = sphi 0, %s115
      %s116 = sphi 0, %s113
      %s117 = sphi 0, %s116
      %s133 = sphi 0, %s117
    $region4: #{tpu_custom_call.1} parent=1 // loop_header_branch
      %19 = sbr.rel (%p17) target = $region8
    $region5: #{tpu_custom_call.1} parent=1 // loop_body
      %s21 = ssub.s32 %s16, 1
      %s22 = ssub.s32 %s16, 2
      %s29 = sadd.s32 1, %s24
      %p30 = scmp.ge.s32.totalorder %s29, 1
      %s31 = scalar_select %p30, 0, %s29
      %s32 = sadd.s32 1, %s23
      %s33 = scalar_select %p30, %s32, %s23
      %p34 = scmp.ge.s32.totalorder %s33, 2
      %s35 = scalar_select %p34, 0, %s33
      %s36 = ssub.s32 %s23, %s35
      %s37 = ssub.s32 %s24, %s31
      %s38 = sor.u32 %s36, %s37
      %p39 = scmp.eq.s32.totalorder %s38, 0
      %s41 = sadd.s32 %s40, 1
      %s42 = scalar_select %p39, %s40, %s41
      %p45 = pneg %p39
      %p46 = scmp.eq.s32.totalorder %s16, 1
      %p47 = por %p45, %p46
      %p48 = scmp.ne.s32.totalorder %s40, %s43
      %p49 = scmp.eq.s32.totalorder %s16, 0
      %p50 = por %p48, %p49
      %p51 = scmp.ne.s32.totalorder %s40, %s43
      %p52 = scmp.eq.s32.totalorder %s21, 1
      %p53 = por %p51, %p52
      %p54 = scmp.ne.s32.totalorder %s43, %s44
      %p55 = scmp.eq.s32.totalorder %s21, 0
      %p56 = por %p54, %p55
      %p57 = scmp.ne.s32.totalorder %s43, %s44
      %p58 = scmp.eq.s32.totalorder %s22, 1
      %p59 = por %p57, %p58
      %p61 = scmp.ne.s32.totalorder %s44, %s60
      %p62 = scmp.eq.s32.totalorder %s22, 0
      %p63 = por %p61, %p62
      %s64 = ssub.s32 %s24, %s31
      %p65 = scmp.eq.s32.totalorder %s64, 0
      %s67 = sadd.s32 %s66, 1
      %s68 = scalar_select %p65, %s66, %s67
      %p71 = pneg %p65
      %p72 = scmp.eq.s32.totalorder %s16, 1
      %p73 = por %p71, %p72
      %p74 = scmp.ne.s32.totalorder %s66, %s69
      %p75 = scmp.eq.s32.totalorder %s16, 0
      %p76 = por %p74, %p75
      %p77 = scmp.ne.s32.totalorder %s66, %s69
      %p78 = scmp.eq.s32.totalorder %s21, 1
      %p79 = por %p77, %p78
      %p80 = scmp.ne.s32.totalorder %s69, %s70
      %p81 = scmp.eq.s32.totalorder %s21, 0
      %p82 = por %p80, %p81
      %p83 = scmp.ne.s32.totalorder %s69, %s70
      %p84 = scmp.eq.s32.totalorder %s22, 1
      %p85 = por %p83, %p84
      %p87 = scmp.ne.s32.totalorder %s70, %s86
      %p88 = scmp.eq.s32.totalorder %s22, 0
      %p89 = por %p87, %p88
      %s91 = sadd.s32 %s90, 1
      %p94 = scmp.eq.s32.totalorder %s16, 1
      %p95 = scmp.ne.s32.totalorder %s90, %s92
      %p96 = scmp.eq.s32.totalorder %s16, 0
      %p97 = por %p95, %p96
      %p98 = scmp.ne.s32.totalorder %s90, %s92
      %p99 = scmp.eq.s32.totalorder %s21, 1
      %p100 = por %p98, %p99
      %p101 = scmp.ne.s32.totalorder %s92, %s93
      %p102 = scmp.eq.s32.totalorder %s21, 0
      %p103 = por %p101, %p102
      %p104 = scmp.ne.s32.totalorder %s92, %s93
      %p105 = scmp.eq.s32.totalorder %s22, 1
      %p106 = por %p104, %p105
      %p108 = scmp.ne.s32.totalorder %s93, %s107
      %p109 = scmp.eq.s32.totalorder %s22, 0
      %p110 = por %p108, %p109
      %s111 = ssub.s32 %s23, %s35
      %p112 = scmp.eq.s32.totalorder %s111, 0
      %s114 = sadd.s32 %s113, 1
      %s115 = scalar_select %p112, %s113, %s114
      %p118 = pneg %p112
      %p119 = scmp.eq.s32.totalorder %s16, 1
      %p120 = por %p118, %p119
      %p121 = scmp.ne.s32.totalorder %s113, %s116
      %p122 = scmp.eq.s32.totalorder %s16, 0
      %p123 = por %p121, %p122
      %p124 = scmp.ne.s32.totalorder %s113, %s116
      %p125 = scmp.eq.s32.totalorder %s21, 1
      %p126 = por %p124, %p125
      %p127 = scmp.ne.s32.totalorder %s116, %s117
      %p128 = scmp.eq.s32.totalorder %s21, 0
      %p129 = por %p127, %p128
      %p130 = scmp.ne.s32.totalorder %s116, %s117
      %p131 = scmp.eq.s32.totalorder %s22, 1
      %p132 = por %p130, %p131
      %p134 = scmp.ne.s32.totalorder %s117, %s133
      %p135 = scmp.eq.s32.totalorder %s22, 0
      %p136 = por %p134, %p135
      %p137 = scmp.le.s32.totalorder 1, %s16
      %p138 = scmp.lt.s32.totalorder %s16, 3
      %p139 = pnand %p137, %p138
      %p140 = pneg %p139
      // Predicated region
      $region9: #{tpu_custom_call.1} parent=5 // pred_check
        _
      $region10: #{tpu_custom_call.1} parent=5 // pred_check_branch
        %142 = sbr.rel (%p139) target = $region12
      $region11: #{tpu_custom_call.1} parent=5 // pred_region
        %s143 = ssub.s32 %s16, 1
        // Predicated region
        $region13: #{tpu_custom_call.1} parent=11 // pred_check
          %p144 = pneg %p82
        $region14: #{tpu_custom_call.1} parent=11 // pred_check_branch
          %146 = sbr.rel (%p144) target = $region16
        $region15: #{tpu_custom_call.1} parent=11 // pred_region
          %s147 = smul.u32 16, %s26
          %s149 = ssub.s32 1024, 1024
          %150 = vsyncadd [#allocation7], %s149
          %s151 = smul.addr %s147, 64
          %s152 = scalar_lea.hbm %s1, %s151
          %s153 = sshll.u32 [#allocation6], 4
          %s154 = int_to_ptr.vmem [resolvable:$true] %s153
          %159 = dma.hbm_to_vmem [thread:$0]  %s152, 1024, %s154, [#allocation7], 64, 64, 4
        $region16: #{tpu_custom_call.1} parent=11 // pred_fallthru
          _
        // Predicated region
        $region17: #{tpu_custom_call.1} parent=11 // pred_check
          %p160 = pneg %p103
        $region18: #{tpu_custom_call.1} parent=11 // pred_check_branch
          %162 = sbr.rel (%p160) target = $region20
        $region19: #{tpu_custom_call.1} parent=11 // pred_region
          _
        $region20: #{tpu_custom_call.1} parent=11 // pred_fallthru
          _
      $region12: #{tpu_custom_call.1} parent=5 // pred_fallthru
        _
      %p163 = scmp.lt.s32.totalorder %s16, 2
      // Predicated region
      $region21: #{tpu_custom_call.1} parent=5 // pred_check
        %p164 = pneg %p163
      $region22: #{tpu_custom_call.1} parent=5 // pred_check_branch
        %166 = sbr.rel (%p164) target = $region24
      $region23: #{tpu_custom_call.1} parent=5 // pred_region
        // Predicated region
        $region25: #{tpu_custom_call.1} parent=23 // pred_check
          %p167 = pneg %p50
        $region26: #{tpu_custom_call.1} parent=23 // pred_check_branch
          %169 = sbr.rel (%p167) target = $region28
        $region27: #{tpu_custom_call.1} parent=23 // pred_region
          %s170 = sand.u32 %s40, 1
          %s171 = scalar_lea.sflag [#allocation4], %s170
          %s172 = sand.u32 %s40, 1
          %s173 = smul.addr %s172, 128
          %s174 = scalar_lea.vmem [#allocation3], %s173
          %s175 = smul.u32 32, %s23
          %s177 = ssub.s32 2048, 2048
          %178 = vsyncadd %s171, %s177
          %s179 = sadd.s32 %s24, %s175
          %s180 = smul.addr %s179, 64
          %s181 = scalar_lea.hbm %s0, %s180
          %s182 = sshll.u32 %s174, 4
          %s183 = int_to_ptr.vmem [resolvable:$true] %s182
          %188 = dma.hbm_to_vmem [thread:$0]  %s181, 2048, %s183, %s171, 64, 64, 4
        $region28: #{tpu_custom_call.1} parent=23 // pred_fallthru
          _
      $region24: #{tpu_custom_call.1} parent=5 // pred_fallthru
        _
      %p189 = scmp.le.s32.totalorder 1, %s16
      %p190 = scmp.lt.s32.totalorder %s16, 3
      %p191 = pnand %p189, %p190
      %p192 = pneg %p191
      // Predicated region
      $region29: #{tpu_custom_call.1} parent=5 // pred_check
        _
      $region30: #{tpu_custom_call.1} parent=5 // pred_check_branch
        %194 = sbr.rel (%p191) target = $region32
      $region31: #{tpu_custom_call.1} parent=5 // pred_region
        %s195 = ssub.s32 %s16, 1
        %s196 = sand.u32 %s43, 1
        %s197 = scalar_lea.sflag [#allocation4], %s196
        %s198 = sand.u32 %s43, 1
        %s199 = smul.addr %s198, 128
        %s200 = scalar_lea.vmem [#allocation3], %s199
        // Predicated region
        $region33: #{tpu_custom_call.1} parent=31 // pred_check
          %p201 = pneg %p56
        $region34: #{tpu_custom_call.1} parent=31 // pred_check_branch
          %203 = sbr.rel (%p201) target = $region36
        $region35: #{tpu_custom_call.1} parent=31 // pred_region
          %204 = dma.done %s197, 2048
        $region36: #{tpu_custom_call.1} parent=31 // pred_fallthru
          _
        // Predicated region
        $region37: #{tpu_custom_call.1} parent=31 // pred_check
          %p205 = pneg %p82
        $region38: #{tpu_custom_call.1} parent=31 // pred_check_branch
          %207 = sbr.rel (%p205) target = $region40
        $region39: #{tpu_custom_call.1} parent=31 // pred_region
          %208 = dma.done [#allocation7], 1024
        $region40: #{tpu_custom_call.1} parent=31 // pred_fallthru
          _
        %s209 = sand.u32 %s43, 1
        %s210 = scalar_lea.sflag [#allocation4], %s209
        %s211 = sand.u32 %s43, 1
        %s212 = smul.addr %s211, 128
        %s213 = scalar_lea.vmem [#allocation3], %s212
        %p214 = pneg %p56
        %p215 = pneg %p53
        %p216 = pneg %p82
        %p217 = pneg %p79
        %p218 = pneg %p103
        %p219 = pneg %p100
        %p220 = pneg %p129
        %p221 = pneg %p126
        %s222 = sand.u32 %s116, 1
        %s223 = scalar_lea.sflag [#allocation5], %s222
        %s224 = sand.u32 %s116, 1
        %s225 = smul.addr %s224, 128
        %s226 = scalar_lea.vmem [#allocation8], %s225
        %s227 = smul.u32 32, %s25
        %s228 = smul.u32 16, %s26
        %s229 = smul.u32 32, %s25
        %p231 = scmp.eq.s32.totalorder %s26, 0
        // Predicated region
        $region41: #{tpu_custom_call.1} parent=31 // pred_check
          %p232 = pneg %p231
        $region42: #{tpu_custom_call.1} parent=31 // pred_check_branch
          %234 = sbr.rel (%p232) target = $region44
        $region43: #{tpu_custom_call.1} parent=31 // pred_region
          %235 = vst [vmem:[#allocation2] sm:$0xff] 0.0
          %236 = vst [vmem:[#allocation2 + $0x8] sm:$0xff] 0.0
          %237 = vst [vmem:[#allocation2 + $0x10] sm:$0xff] 0.0
          %238 = vst [vmem:[#allocation2 + $0x18] sm:$0xff] 0.0
          %239 = vst [vmem:[#allocation2 + $0x20] sm:$0xff] 0.0
          %240 = vst [vmem:[#allocation2 + $0x28] sm:$0xff] 0.0
          %241 = vst [vmem:[#allocation2 + $0x30] sm:$0xff] 0.0
          %242 = vst [vmem:[#allocation2 + $0x38] sm:$0xff] 0.0
          %243 = vst [vmem:[#allocation2 + $0x40] sm:$0xff] 0.0
          %244 = vst [vmem:[#allocation2 + $0x48] sm:$0xff] 0.0
          %245 = vst [vmem:[#allocation2 + $0x50] sm:$0xff] 0.0
          %246 = vst [vmem:[#allocation2 + $0x58] sm:$0xff] 0.0
          %247 = vst [vmem:[#allocation2 + $0x60] sm:$0xff] 0.0
          %248 = vst [vmem:[#allocation2 + $0x68] sm:$0xff] 0.0
          %249 = vst [vmem:[#allocation2 + $0x70] sm:$0xff] 0.0
          %250 = vst [vmem:[#allocation2 + $0x78] sm:$0xff] 0.0
          %251 = vst [vmem:[#allocation2 + $0x80] sm:$0xff] 0.0
          %252 = vst [vmem:[#allocation2 + $0x88] sm:$0xff] 0.0
          %253 = vst [vmem:[#allocation2 + $0x90] sm:$0xff] 0.0
          %254 = vst [vmem:[#allocation2 + $0x98] sm:$0xff] 0.0
          %255 = vst [vmem:[#allocation2 + $0xa0] sm:$0xff] 0.0
          %256 = vst [vmem:[#allocation2 + $0xa8] sm:$0xff] 0.0
          %257 = vst [vmem:[#allocation2 + $0xb0] sm:$0xff] 0.0
          %258 = vst [vmem:[#allocation2 + $0xb8] sm:$0xff] 0.0
          %259 = vst [vmem:[#allocation2 + $0xc0] sm:$0xff] 0.0
          %260 = vst [vmem:[#allocation2 + $0xc8] sm:$0xff] 0.0
          %261 = vst [vmem:[#allocation2 + $0xd0] sm:$0xff] 0.0
          %262 = vst [vmem:[#allocation2 + $0xd8] sm:$0xff] 0.0
          %263 = vst [vmem:[#allocation2 + $0xe0] sm:$0xff] 0.0
          %264 = vst [vmem:[#allocation2 + $0xe8] sm:$0xff] 0.0
          %265 = vst [vmem:[#allocation2 + $0xf0] sm:$0xff] 0.0
          %266 = vst [vmem:[#allocation2 + $0xf8] sm:$0xff] 0.0
        $region44: #{tpu_custom_call.1} parent=31 // pred_fallthru
          _
        %v267 = vld [vmem:[#allocation2] sm:$0xff]
        %v268 = vld [vmem:[#allocation2 + $0x8] sm:$0xff]
        %v269 = vld [vmem:[#allocation2 + $0x10] sm:$0xff]
        %v270 = vld [vmem:[#allocation2 + $0x18] sm:$0xff]
        %v271 = vld [vmem:[#allocation2 + $0x20] sm:$0xff]
        %v272 = vld [vmem:[#allocation2 + $0x28] sm:$0xff]
        %v273 = vld [vmem:[#allocation2 + $0x30] sm:$0xff]
        %v274 = vld [vmem:[#allocation2 + $0x38] sm:$0xff]
        %v275 = vld [vmem:[#allocation2 + $0x40] sm:$0xff]
        %v276 = vld [vmem:[#allocation2 + $0x48] sm:$0xff]
        %v277 = vld [vmem:[#allocation2 + $0x50] sm:$0xff]
        %v278 = vld [vmem:[#allocation2 + $0x58] sm:$0xff]
        %v279 = vld [vmem:[#allocation2 + $0x60] sm:$0xff]
        %v280 = vld [vmem:[#allocation2 + $0x68] sm:$0xff]
        %v281 = vld [vmem:[#allocation2 + $0x70] sm:$0xff]
        %v282 = vld [vmem:[#allocation2 + $0x78] sm:$0xff]
        %v283 = vld [vmem:[#allocation2 + $0x80] sm:$0xff]
        %v284 = vld [vmem:[#allocation2 + $0x88] sm:$0xff]
        %v285 = vld [vmem:[#allocation2 + $0x90] sm:$0xff]
        %v286 = vld [vmem:[#allocation2 + $0x98] sm:$0xff]
        %v287 = vld [vmem:[#allocation2 + $0xa0] sm:$0xff]
        %v288 = vld [vmem:[#allocation2 + $0xa8] sm:$0xff]
        %v289 = vld [vmem:[#allocation2 + $0xb0] sm:$0xff]
        %v290 = vld [vmem:[#allocation2 + $0xb8] sm:$0xff]
        %v291 = vld [vmem:[#allocation2 + $0xc0] sm:$0xff]
        %v292 = vld [vmem:[#allocation2 + $0xc8] sm:$0xff]
        %v293 = vld [vmem:[#allocation2 + $0xd0] sm:$0xff]
        %v294 = vld [vmem:[#allocation2 + $0xd8] sm:$0xff]
        %v295 = vld [vmem:[#allocation2 + $0xe0] sm:$0xff]
        %v296 = vld [vmem:[#allocation2 + $0xe8] sm:$0xff]
        %v297 = vld [vmem:[#allocation2 + $0xf0] sm:$0xff]
        %v298 = vld [vmem:[#allocation2 + $0xf8] sm:$0xff]
        %v299 = vld [vmem:[%s200] sm:$0xf]
        %v300 = vld [vmem:[%s200 + $0x4] sm:$0xf]
        %v301 = vld [vmem:[%s200 + $0x8] sm:$0xf]
        %v302 = vld [vmem:[%s200 + $0xc] sm:$0xf]
        %v303 = vld [vmem:[%s200 + $0x10] sm:$0xf]
        %v304 = vld [vmem:[%s200 + $0x14] sm:$0xf]
        %v305 = vld [vmem:[%s200 + $0x18] sm:$0xf]
        %v306 = vld [vmem:[%s200 + $0x1c] sm:$0xf]
        %v307 = vld [vmem:[%s200 + $0x20] sm:$0xf]
        %v308 = vld [vmem:[%s200 + $0x24] sm:$0xf]
        %v309 = vld [vmem:[%s200 + $0x28] sm:$0xf]
        %v310 = vld [vmem:[%s200 + $0x2c] sm:$0xf]
        %v311 = vld [vmem:[%s200 + $0x30] sm:$0xf]
        %v312 = vld [vmem:[%s200 + $0x34] sm:$0xf]
        %v313 = vld [vmem:[%s200 + $0x38] sm:$0xf]
        %v314 = vld [vmem:[%s200 + $0x3c] sm:$0xf]
        %v315 = vld [vmem:[%s200 + $0x40] sm:$0xf]
        %v316 = vld [vmem:[%s200 + $0x44] sm:$0xf]
        %v317 = vld [vmem:[%s200 + $0x48] sm:$0xf]
        %v318 = vld [vmem:[%s200 + $0x4c] sm:$0xf]
        %v319 = vld [vmem:[%s200 + $0x50] sm:$0xf]
        %v320 = vld [vmem:[%s200 + $0x54] sm:$0xf]
        %v321 = vld [vmem:[%s200 + $0x58] sm:$0xf]
        %v322 = vld [vmem:[%s200 + $0x5c] sm:$0xf]
        %v323 = vld [vmem:[%s200 + $0x60] sm:$0xf]
        %v324 = vld [vmem:[%s200 + $0x64] sm:$0xf]
        %v325 = vld [vmem:[%s200 + $0x68] sm:$0xf]
        %v326 = vld [vmem:[%s200 + $0x6c] sm:$0xf]
        %v327 = vld [vmem:[%s200 + $0x70] sm:$0xf]
        %v328 = vld [vmem:[%s200 + $0x74] sm:$0xf]
        %v329 = vld [vmem:[%s200 + $0x78] sm:$0xf]
        %v330 = vld [vmem:[%s200 + $0x7c] sm:$0xf]
        %v331 = vld [vmem:[#allocation6] sm:$0xf]
        %v332 = vld [vmem:[#allocation6 + $0x4] sm:$0xf]
        %v333 = vld [vmem:[#allocation6 + $0x8] sm:$0xf]
        %v334 = vld [vmem:[#allocation6 + $0xc] sm:$0xf]
        %v335 = vld [vmem:[#allocation6 + $0x10] sm:$0xf]
        %v336 = vld [vmem:[#allocation6 + $0x14] sm:$0xf]
        %v337 = vld [vmem:[#allocation6 + $0x18] sm:$0xf]
        %v338 = vld [vmem:[#allocation6 + $0x1c] sm:$0xf]
        %v339 = vld [vmem:[#allocation6 + $0x20] sm:$0xf]
        %v340 = vld [vmem:[#allocation6 + $0x24] sm:$0xf]
        %v341 = vld [vmem:[#allocation6 + $0x28] sm:$0xf]
        %v342 = vld [vmem:[#allocation6 + $0x2c] sm:$0xf]
        %v343 = vld [vmem:[#allocation6 + $0x30] sm:$0xf]
        %v344 = vld [vmem:[#allocation6 + $0x34] sm:$0xf]
        %v345 = vld [vmem:[#allocation6 + $0x38] sm:$0xf]
        %v346 = vld [vmem:[#allocation6 + $0x3c] sm:$0xf]
        %v379 = vunpack.c.l.b16 %v299
        %v380 = vunpack.c.l.b16 %v300
        %v381 = vunpack.c.l.b16 %v301
        %v382 = vunpack.c.l.b16 %v302
        %v383 = vunpack.c.l.b16 %v303
        %v384 = vunpack.c.l.b16 %v304
        %v385 = vunpack.c.l.b16 %v305
        %v386 = vunpack.c.l.b16 %v306
        %v387 = vunpack.c.l.b16 %v307
        %v388 = vunpack.c.l.b16 %v308
        %v389 = vunpack.c.l.b16 %v309
        %v390 = vunpack.c.l.b16 %v310
        %v391 = vunpack.c.l.b16 %v311
        %v392 = vunpack.c.l.b16 %v312
        %v393 = vunpack.c.l.b16 %v313
        %v394 = vunpack.c.l.b16 %v314
        %v395 = vunpack.c.l.b16 %v315
        %v396 = vunpack.c.l.b16 %v316
        %v397 = vunpack.c.l.b16 %v317
        %v398 = vunpack.c.l.b16 %v318
        %v399 = vunpack.c.l.b16 %v319
        %v400 = vunpack.c.l.b16 %v320
        %v401 = vunpack.c.l.b16 %v321
        %v402 = vunpack.c.l.b16 %v322
        %v403 = vunpack.c.l.b16 %v323
        %v404 = vunpack.c.l.b16 %v324
        %v405 = vunpack.c.l.b16 %v325
        %v406 = vunpack.c.l.b16 %v326
        %v407 = vunpack.c.l.b16 %v327
        %v408 = vunpack.c.l.b16 %v328
        %v409 = vunpack.c.l.b16 %v329
        %v410 = vunpack.c.l.b16 %v330
        %v411 = vpack.c.b16 %v380, %v379
        %v412 = vpack.c.b16 %v382, %v381
        %v413 = vpack.c.b16 %v384, %v383
        %v414 = vpack.c.b16 %v386, %v385
        %v415 = vpack.c.b16 %v388, %v387
        %v416 = vpack.c.b16 %v390, %v389
        %v417 = vpack.c.b16 %v392, %v391
        %v418 = vpack.c.b16 %v394, %v393
        %v419 = vpack.c.b16 %v396, %v395
        %v420 = vpack.c.b16 %v398, %v397
        %v421 = vpack.c.b16 %v400, %v399
        %v422 = vpack.c.b16 %v402, %v401
        %v423 = vpack.c.b16 %v404, %v403
        %v424 = vpack.c.b16 %v406, %v405
        %v425 = vpack.c.b16 %v408, %v407
        %v426 = vpack.c.b16 %v410, %v409
        %v459 = vunpack.c.l.b16 %v331
        %v460 = vunpack.c.l.b16 %v332
        %v461 = vunpack.c.l.b16 %v333
        %v462 = vunpack.c.l.b16 %v334
        %v463 = vunpack.c.l.b16 %v335
        %v464 = vunpack.c.l.b16 %v336
        %v465 = vunpack.c.l.b16 %v337
        %v466 = vunpack.c.l.b16 %v338
        %v467 = vunpack.c.l.b16 %v339
        %v468 = vunpack.c.l.b16 %v340
        %v469 = vunpack.c.l.b16 %v341
        %v470 = vunpack.c.l.b16 %v342
        %v471 = vunpack.c.l.b16 %v343
        %v472 = vunpack.c.l.b16 %v344
        %v473 = vunpack.c.l.b16 %v345
        %v474 = vunpack.c.l.b16 %v346
        %v475 = vpack.c.b16 %v460, %v459
        %v476 = vpack.c.b16 %v462, %v461
        %v477 = vpack.c.b16 %v464, %v463
        %v478 = vpack.c.b16 %v466, %v465
        %v479 = vpack.c.b16 %v468, %v467
        %v480 = vpack.c.b16 %v470, %v469
        %v481 = vpack.c.b16 %v472, %v471
        %v482 = vpack.c.b16 %v474, %v473
        %491 = vmatprep.subr.bf16.mxu0 0
        %492 = vmatpush1.bf16.msra.mxu0 %v482
        %493 = vmatprep.subr.bf16.mxu0 0
        %494 = vmatpush1.bf16.msra.mxu0 %v481
        %495 = vmatprep.subr.bf16.mxu0 0
        %496 = vmatpush1.bf16.msra.mxu0 %v480
        %497 = vmatprep.subr.bf16.mxu0 0
        %498 = vmatpush1.bf16.msra.mxu0 %v479
        %499 = vmatprep.subr.bf16.mxu0 0
        %500 = vmatpush1.bf16.msra.mxu0 %v478
        %501 = vmatprep.subr.bf16.mxu0 0
        %502 = vmatpush1.bf16.msra.mxu0 %v477
        %503 = vmatprep.subr.bf16.mxu0 0
        %504 = vmatpush1.bf16.msra.mxu0 %v476
        %505 = vmatprep.subr.bf16.mxu0 0
        %506 = vmatpush1.bf16.msra.mxu0 %v475
        %507 = vmatprep.subr.bf16.mxu0 0
        %508 = vmatpush2.bf16.msra.mxu0 0
        %509 = vmatprep.subr.bf16.mxu0 0
        %510 = vmatpush2.bf16.msra.mxu0 0
        %511 = vmatprep.subr.bf16.mxu0 0
        %512 = vmatpush2.bf16.msra.mxu0 0
        %513 = vmatprep.subr.bf16.mxu0 0
        %514 = vmatpush2.bf16.msra.mxu0 0
        %515 = vmatprep.subr.bf16.mxu0 0
        %516 = vmatpush2.bf16.msra.mxu0 0
        %517 = vmatprep.subr.bf16.mxu0 0
        %518 = vmatpush2.bf16.msra.mxu0 0
        %519 = vmatprep.subr.bf16.mxu0 0
        %520 = vmatpush2.bf16.msra.mxu0 0
        %521 = vmatprep.subr.bf16.mxu0 0
        %522 = vmatpush2.bf16.msra.mxu0 0
        %523 = vmatprep.mubr.bf16.mxu0 0
        %524 = vmatmul.mubr.bf16.gmra.mxu0 %v411
        %v525 = vpop.f32.mrf.mxu0
        %v526 = vadd.f32 0.0, %v525
        %v527 = vpop.f32.mrf.mxu0
        %v528 = vpop.f32.mrf.mxu0
        %v529 = vadd.f32 0.0, %v528
        %v530 = vpop.f32.mrf.mxu0
        %531 = vmatprep.mubr.bf16.mxu0 0
        %532 = vmatmul.mubr.bf16.gmra.mxu0 %v412
        %v533 = vpop.f32.mrf.mxu0
        %v534 = vadd.f32 0.0, %v533
        %v535 = vpop.f32.mrf.mxu0
        %v536 = vpop.f32.mrf.mxu0
        %v537 = vadd.f32 0.0, %v536
        %v538 = vpop.f32.mrf.mxu0
        %539 = vmatprep.mubr.bf16.mxu0 0
        %540 = vmatmul.mubr.bf16.gmra.mxu0 %v413
        %v541 = vpop.f32.mrf.mxu0
        %v542 = vadd.f32 0.0, %v541
        %v543 = vpop.f32.mrf.mxu0
        %v544 = vpop.f32.mrf.mxu0
        %v545 = vadd.f32 0.0, %v544
        %v546 = vpop.f32.mrf.mxu0
        %547 = vmatprep.mubr.bf16.mxu0 0
        %548 = vmatmul.mubr.bf16.gmra.mxu0 %v414
        %v549 = vpop.f32.mrf.mxu0
        %v550 = vadd.f32 0.0, %v549
        %v551 = vpop.f32.mrf.mxu0
        %v552 = vpop.f32.mrf.mxu0
        %v553 = vadd.f32 0.0, %v552
        %v554 = vpop.f32.mrf.mxu0
        %555 = vmatprep.mubr.bf16.mxu0 0
        %556 = vmatmul.mubr.bf16.gmra.mxu0 %v415
        %v557 = vpop.f32.mrf.mxu0
        %v558 = vadd.f32 0.0, %v557
        %v559 = vpop.f32.mrf.mxu0
        %v560 = vpop.f32.mrf.mxu0
        %v561 = vadd.f32 0.0, %v560
        %v562 = vpop.f32.mrf.mxu0
        %563 = vmatprep.mubr.bf16.mxu0 0
        %564 = vmatmul.mubr.bf16.gmra.mxu0 %v416
        %v565 = vpop.f32.mrf.mxu0
        %v566 = vadd.f32 0.0, %v565
        %v567 = vpop.f32.mrf.mxu0
        %v568 = vpop.f32.mrf.mxu0
        %v569 = vadd.f32 0.0, %v568
        %v570 = vpop.f32.mrf.mxu0
        %571 = vmatprep.mubr.bf16.mxu0 0
        %572 = vmatmul.mubr.bf16.gmra.mxu0 %v417
        %v573 = vpop.f32.mrf.mxu0
        %v574 = vadd.f32 0.0, %v573
        %v575 = vpop.f32.mrf.mxu0
        %v576 = vpop.f32.mrf.mxu0
        %v577 = vadd.f32 0.0, %v576
        %v578 = vpop.f32.mrf.mxu0
        %579 = vmatprep.mubr.bf16.mxu0 0
        %580 = vmatmul.mubr.bf16.gmra.mxu0 %v418
        %v581 = vpop.f32.mrf.mxu0
        %v582 = vadd.f32 0.0, %v581
        %v583 = vpop.f32.mrf.mxu0
        %v584 = vpop.f32.mrf.mxu0
        %v585 = vadd.f32 0.0, %v584
        %v586 = vpop.f32.mrf.mxu0
        %587 = vmatprep.mubr.bf16.mxu0 0
        %588 = vmatmul.mubr.bf16.gmra.mxu0 %v419
        %v589 = vpop.f32.mrf.mxu0
        %v590 = vadd.f32 0.0, %v589
        %v591 = vpop.f32.mrf.mxu0
        %v592 = vpop.f32.mrf.mxu0
        %v593 = vadd.f32 0.0, %v592
        %v594 = vpop.f32.mrf.mxu0
        %595 = vmatprep.mubr.bf16.mxu0 0
        %596 = vmatmul.mubr.bf16.gmra.mxu0 %v420
        %v597 = vpop.f32.mrf.mxu0
        %v598 = vadd.f32 0.0, %v597
        %v599 = vpop.f32.mrf.mxu0
        %v600 = vpop.f32.mrf.mxu0
        %v601 = vadd.f32 0.0, %v600
        %v602 = vpop.f32.mrf.mxu0
        %603 = vmatprep.mubr.bf16.mxu0 0
        %604 = vmatmul.mubr.bf16.gmra.mxu0 %v421
        %v605 = vpop.f32.mrf.mxu0
        %v606 = vadd.f32 0.0, %v605
        %v607 = vpop.f32.mrf.mxu0
        %v608 = vpop.f32.mrf.mxu0
        %v609 = vadd.f32 0.0, %v608
        %v610 = vpop.f32.mrf.mxu0
        %611 = vmatprep.mubr.bf16.mxu0 0
        %612 = vmatmul.mubr.bf16.gmra.mxu0 %v422
        %v613 = vpop.f32.mrf.mxu0
        %v614 = vadd.f32 0.0, %v613
        %v615 = vpop.f32.mrf.mxu0
        %v616 = vpop.f32.mrf.mxu0
        %v617 = vadd.f32 0.0, %v616
        %v618 = vpop.f32.mrf.mxu0
        %619 = vmatprep.mubr.bf16.mxu0 0
        %620 = vmatmul.mubr.bf16.gmra.mxu0 %v423
        %v621 = vpop.f32.mrf.mxu0
        %v622 = vadd.f32 0.0, %v621
        %v623 = vpop.f32.mrf.mxu0
        %v624 = vpop.f32.mrf.mxu0
        %v625 = vadd.f32 0.0, %v624
        %v626 = vpop.f32.mrf.mxu0
        %627 = vmatprep.mubr.bf16.mxu0 0
        %628 = vmatmul.mubr.bf16.gmra.mxu0 %v424
        %v629 = vpop.f32.mrf.mxu0
        %v630 = vadd.f32 0.0, %v629
        %v631 = vpop.f32.mrf.mxu0
        %v632 = vpop.f32.mrf.mxu0
        %v633 = vadd.f32 0.0, %v632
        %v634 = vpop.f32.mrf.mxu0
        %635 = vmatprep.mubr.bf16.mxu0 0
        %636 = vmatmul.mubr.bf16.gmra.mxu0 %v425
        %v637 = vpop.f32.mrf.mxu0
        %v638 = vadd.f32 0.0, %v637
        %v639 = vpop.f32.mrf.mxu0
        %v640 = vpop.f32.mrf.mxu0
        %v641 = vadd.f32 0.0, %v640
        %v642 = vpop.f32.mrf.mxu0
        %643 = vmatprep.mubr.bf16.mxu0 0
        %644 = vmatmul.mubr.bf16.gmra.mxu0 %v426
        %v645 = vpop.f32.mrf.mxu0
        %v646 = vadd.f32 0.0, %v645
        %v647 = vpop.f32.mrf.mxu0
        %v648 = vpop.f32.mrf.mxu0
        %v649 = vadd.f32 0.0, %v648
        %v650 = vpop.f32.mrf.mxu0
        %651 = vdwg.mxu0
        %v652 = vadd.f32 %v267, %v526
        %v653 = vadd.f32 %v268, %v529
        %v654 = vadd.f32 %v269, %v534
        %v655 = vadd.f32 %v270, %v537
        %v656 = vadd.f32 %v271, %v542
        %v657 = vadd.f32 %v272, %v545
        %v658 = vadd.f32 %v273, %v550
        %v659 = vadd.f32 %v274, %v553
        %v660 = vadd.f32 %v275, %v558
        %v661 = vadd.f32 %v276, %v561
        %v662 = vadd.f32 %v277, %v566
        %v663 = vadd.f32 %v278, %v569
        %v664 = vadd.f32 %v279, %v574
        %v665 = vadd.f32 %v280, %v577
        %v666 = vadd.f32 %v281, %v582
        %v667 = vadd.f32 %v282, %v585
        %v668 = vadd.f32 %v283, %v590
        %v669 = vadd.f32 %v284, %v593
        %v670 = vadd.f32 %v285, %v598
        %v671 = vadd.f32 %v286, %v601
        %v672 = vadd.f32 %v287, %v606
        %v673 = vadd.f32 %v288, %v609
        %v674 = vadd.f32 %v289, %v614
        %v675 = vadd.f32 %v290, %v617
        %v676 = vadd.f32 %v291, %v622
        %v677 = vadd.f32 %v292, %v625
        %v678 = vadd.f32 %v293, %v630
        %v679 = vadd.f32 %v294, %v633
        %v680 = vadd.f32 %v295, %v638
        %v681 = vadd.f32 %v296, %v641
        %v682 = vadd.f32 %v297, %v646
        %v683 = vadd.f32 %v298, %v649
        %684 = vst [vmem:[#allocation2] sm:$0xff] %v652
        %685 = vst [vmem:[#allocation2 + $0x8] sm:$0xff] %v653
        %686 = vst [vmem:[#allocation2 + $0x10] sm:$0xff] %v654
        %687 = vst [vmem:[#allocation2 + $0x18] sm:$0xff] %v655
        %688 = vst [vmem:[#allocation2 + $0x20] sm:$0xff] %v656
        %689 = vst [vmem:[#allocation2 + $0x28] sm:$0xff] %v657
        %690 = vst [vmem:[#allocation2 + $0x30] sm:$0xff] %v658
        %691 = vst [vmem:[#allocation2 + $0x38] sm:$0xff] %v659
        %692 = vst [vmem:[#allocation2 + $0x40] sm:$0xff] %v660
        %693 = vst [vmem:[#allocation2 + $0x48] sm:$0xff] %v661
        %694 = vst [vmem:[#allocation2 + $0x50] sm:$0xff] %v662
        %695 = vst [vmem:[#allocation2 + $0x58] sm:$0xff] %v663
        %696 = vst [vmem:[#allocation2 + $0x60] sm:$0xff] %v664
        %697 = vst [vmem:[#allocation2 + $0x68] sm:$0xff] %v665
        %698 = vst [vmem:[#allocation2 + $0x70] sm:$0xff] %v666
        %699 = vst [vmem:[#allocation2 + $0x78] sm:$0xff] %v667
        %700 = vst [vmem:[#allocation2 + $0x80] sm:$0xff] %v668
        %701 = vst [vmem:[#allocation2 + $0x88] sm:$0xff] %v669
        %702 = vst [vmem:[#allocation2 + $0x90] sm:$0xff] %v670
        %703 = vst [vmem:[#allocation2 + $0x98] sm:$0xff] %v671
        %704 = vst [vmem:[#allocation2 + $0xa0] sm:$0xff] %v672
        %705 = vst [vmem:[#allocation2 + $0xa8] sm:$0xff] %v673
        %706 = vst [vmem:[#allocation2 + $0xb0] sm:$0xff] %v674
        %707 = vst [vmem:[#allocation2 + $0xb8] sm:$0xff] %v675
        %708 = vst [vmem:[#allocation2 + $0xc0] sm:$0xff] %v676
        %709 = vst [vmem:[#allocation2 + $0xc8] sm:$0xff] %v677
        %710 = vst [vmem:[#allocation2 + $0xd0] sm:$0xff] %v678
        %711 = vst [vmem:[#allocation2 + $0xd8] sm:$0xff] %v679
        %712 = vst [vmem:[#allocation2 + $0xe0] sm:$0xff] %v680
        %713 = vst [vmem:[#allocation2 + $0xe8] sm:$0xff] %v681
        %714 = vst [vmem:[#allocation2 + $0xf0] sm:$0xff] %v682
        %715 = vst [vmem:[#allocation2 + $0xf8] sm:$0xff] %v683
        // Predicated region
        $region45: #{tpu_custom_call.1} parent=31 // pred_check
          %p716 = pneg %p231
        $region46: #{tpu_custom_call.1} parent=31 // pred_check_branch
          %718 = sbr.rel (%p716) target = $region48
        $region47: #{tpu_custom_call.1} parent=31 // pred_region
          %v719 = vld [vmem:[#allocation2] sm:$0xff]
          %v720 = vld [vmem:[#allocation2 + $0x8] sm:$0xff]
          %v721 = vld [vmem:[#allocation2 + $0x10] sm:$0xff]
          %v722 = vld [vmem:[#allocation2 + $0x18] sm:$0xff]
          %v723 = vld [vmem:[#allocation2 + $0x20] sm:$0xff]
          %v724 = vld [vmem:[#allocation2 + $0x28] sm:$0xff]
          %v725 = vld [vmem:[#allocation2 + $0x30] sm:$0xff]
          %v726 = vld [vmem:[#allocation2 + $0x38] sm:$0xff]
          %v727 = vld [vmem:[#allocation2 + $0x40] sm:$0xff]
          %v728 = vld [vmem:[#allocation2 + $0x48] sm:$0xff]
          %v729 = vld [vmem:[#allocation2 + $0x50] sm:$0xff]
          %v730 = vld [vmem:[#allocation2 + $0x58] sm:$0xff]
          %v731 = vld [vmem:[#allocation2 + $0x60] sm:$0xff]
          %v732 = vld [vmem:[#allocation2 + $0x68] sm:$0xff]
          %v733 = vld [vmem:[#allocation2 + $0x70] sm:$0xff]
          %v734 = vld [vmem:[#allocation2 + $0x78] sm:$0xff]
          %v735 = vld [vmem:[#allocation2 + $0x80] sm:$0xff]
          %v736 = vld [vmem:[#allocation2 + $0x88] sm:$0xff]
          %v737 = vld [vmem:[#allocation2 + $0x90] sm:$0xff]
          %v738 = vld [vmem:[#allocation2 + $0x98] sm:$0xff]
          %v739 = vld [vmem:[#allocation2 + $0xa0] sm:$0xff]
          %v740 = vld [vmem:[#allocation2 + $0xa8] sm:$0xff]
          %v741 = vld [vmem:[#allocation2 + $0xb0] sm:$0xff]
          %v742 = vld [vmem:[#allocation2 + $0xb8] sm:$0xff]
          %v743 = vld [vmem:[#allocation2 + $0xc0] sm:$0xff]
          %v744 = vld [vmem:[#allocation2 + $0xc8] sm:$0xff]
          %v745 = vld [vmem:[#allocation2 + $0xd0] sm:$0xff]
          %v746 = vld [vmem:[#allocation2 + $0xd8] sm:$0xff]
          %v747 = vld [vmem:[#allocation2 + $0xe0] sm:$0xff]
          %v748 = vld [vmem:[#allocation2 + $0xe8] sm:$0xff]
          %v749 = vld [vmem:[#allocation2 + $0xf0] sm:$0xff]
          %v750 = vld [vmem:[#allocation2 + $0xf8] sm:$0xff]
          %v751 = vld [vmem:[%s2] sm:$0x1]
          %v753 = vlaneseq
          %v754 = vshrl.u32 %v753, 7
          %v755 = vsub.s32 0, %v754
          %v756 = vrot.slane %v751, %v755
          %v758 = vadd.f32 %v719, %v756
          %v759 = vadd.f32 %v720, %v756
          %v760 = vadd.f32 %v721, %v756
          %v761 = vadd.f32 %v722, %v756
          %v762 = vadd.f32 %v723, %v756
          %v763 = vadd.f32 %v724, %v756
          %v764 = vadd.f32 %v725, %v756
          %v765 = vadd.f32 %v726, %v756
          %v766 = vadd.f32 %v727, %v756
          %v767 = vadd.f32 %v728, %v756
          %v768 = vadd.f32 %v729, %v756
          %v769 = vadd.f32 %v730, %v756
          %v770 = vadd.f32 %v731, %v756
          %v771 = vadd.f32 %v732, %v756
          %v772 = vadd.f32 %v733, %v756
          %v773 = vadd.f32 %v734, %v756
          %v774 = vadd.f32 %v735, %v756
          %v775 = vadd.f32 %v736, %v756
          %v776 = vadd.f32 %v737, %v756
          %v777 = vadd.f32 %v738, %v756
          %v778 = vadd.f32 %v739, %v756
          %v779 = vadd.f32 %v740, %v756
          %v780 = vadd.f32 %v741, %v756
          %v781 = vadd.f32 %v742, %v756
          %v782 = vadd.f32 %v743, %v756
          %v783 = vadd.f32 %v744, %v756
          %v784 = vadd.f32 %v745, %v756
          %v785 = vadd.f32 %v746, %v756
          %v786 = vadd.f32 %v747, %v756
          %v787 = vadd.f32 %v748, %v756
          %v788 = vadd.f32 %v749, %v756
          %v789 = vadd.f32 %v750, %v756
          %vm790 = vcmp.ge.f32.partialorder %v758, 0.0
          %vm791 = vcmp.ge.f32.partialorder %v759, 0.0
          %vm792 = vcmp.ge.f32.partialorder %v760, 0.0
          %vm793 = vcmp.ge.f32.partialorder %v761, 0.0
          %vm794 = vcmp.ge.f32.partialorder %v762, 0.0
          %vm795 = vcmp.ge.f32.partialorder %v763, 0.0
          %vm796 = vcmp.ge.f32.partialorder %v764, 0.0
          %vm797 = vcmp.ge.f32.partialorder %v765, 0.0
          %vm798 = vcmp.ge.f32.partialorder %v766, 0.0
          %vm799 = vcmp.ge.f32.partialorder %v767, 0.0
          %vm800 = vcmp.ge.f32.partialorder %v768, 0.0
          %vm801 = vcmp.ge.f32.partialorder %v769, 0.0
          %vm802 = vcmp.ge.f32.partialorder %v770, 0.0
          %vm803 = vcmp.ge.f32.partialorder %v771, 0.0
          %vm804 = vcmp.ge.f32.partialorder %v772, 0.0
          %vm805 = vcmp.ge.f32.partialorder %v773, 0.0
          %vm806 = vcmp.ge.f32.partialorder %v774, 0.0
          %vm807 = vcmp.ge.f32.partialorder %v775, 0.0
          %vm808 = vcmp.ge.f32.partialorder %v776, 0.0
          %vm809 = vcmp.ge.f32.partialorder %v777, 0.0
          %vm810 = vcmp.ge.f32.partialorder %v778, 0.0
          %vm811 = vcmp.ge.f32.partialorder %v779, 0.0
          %vm812 = vcmp.ge.f32.partialorder %v780, 0.0
          %vm813 = vcmp.ge.f32.partialorder %v781, 0.0
          %vm814 = vcmp.ge.f32.partialorder %v782, 0.0
          %vm815 = vcmp.ge.f32.partialorder %v783, 0.0
          %vm816 = vcmp.ge.f32.partialorder %v784, 0.0
          %vm817 = vcmp.ge.f32.partialorder %v785, 0.0
          %vm818 = vcmp.ge.f32.partialorder %v786, 0.0
          %vm819 = vcmp.ge.f32.partialorder %v787, 0.0
          %vm820 = vcmp.ge.f32.partialorder %v788, 0.0
          %vm821 = vcmp.ge.f32.partialorder %v789, 0.0
          %v822 = vmul.f32 %v758, 0.2
          %v823 = vmul.f32 %v759, 0.2
          %v824 = vmul.f32 %v760, 0.2
          %v825 = vmul.f32 %v761, 0.2
          %v826 = vmul.f32 %v762, 0.2
          %v827 = vmul.f32 %v763, 0.2
          %v828 = vmul.f32 %v764, 0.2
          %v829 = vmul.f32 %v765, 0.2
          %v830 = vmul.f32 %v766, 0.2
          %v831 = vmul.f32 %v767, 0.2
          %v832 = vmul.f32 %v768, 0.2
          %v833 = vmul.f32 %v769, 0.2
          %v834 = vmul.f32 %v770, 0.2
          %v835 = vmul.f32 %v771, 0.2
          %v836 = vmul.f32 %v772, 0.2
          %v837 = vmul.f32 %v773, 0.2
          %v838 = vmul.f32 %v774, 0.2
          %v839 = vmul.f32 %v775, 0.2
          %v840 = vmul.f32 %v776, 0.2
          %v841 = vmul.f32 %v777, 0.2
          %v842 = vmul.f32 %v778, 0.2
          %v843 = vmul.f32 %v779, 0.2
          %v844 = vmul.f32 %v780, 0.2
          %v845 = vmul.f32 %v781, 0.2
          %v846 = vmul.f32 %v782, 0.2
          %v847 = vmul.f32 %v783, 0.2
          %v848 = vmul.f32 %v784, 0.2
          %v849 = vmul.f32 %v785, 0.2
          %v850 = vmul.f32 %v786, 0.2
          %v851 = vmul.f32 %v787, 0.2
          %v852 = vmul.f32 %v788, 0.2
          %v853 = vmul.f32 %v789, 0.2
          %v854 = vsel %vm790, %v758, %v822
          %v855 = vsel %vm791, %v759, %v823
          %v856 = vsel %vm792, %v760, %v824
          %v857 = vsel %vm793, %v761, %v825
          %v858 = vsel %vm794, %v762, %v826
          %v859 = vsel %vm795, %v763, %v827
          %v860 = vsel %vm796, %v764, %v828
          %v861 = vsel %vm797, %v765, %v829
          %v862 = vsel %vm798, %v766, %v830
          %v863 = vsel %vm799, %v767, %v831
          %v864 = vsel %vm800, %v768, %v832
          %v865 = vsel %vm801, %v769, %v833
          %v866 = vsel %vm802, %v770, %v834
          %v867 = vsel %vm803, %v771, %v835
          %v868 = vsel %vm804, %v772, %v836
          %v869 = vsel %vm805, %v773, %v837
          %v870 = vsel %vm806, %v774, %v838
          %v871 = vsel %vm807, %v775, %v839
          %v872 = vsel %vm808, %v776, %v840
          %v873 = vsel %vm809, %v777, %v841
          %v874 = vsel %vm810, %v778, %v842
          %v875 = vsel %vm811, %v779, %v843
          %v876 = vsel %vm812, %v780, %v844
          %v877 = vsel %vm813, %v781, %v845
          %v878 = vsel %vm814, %v782, %v846
          %v879 = vsel %vm815, %v783, %v847
          %v880 = vsel %vm816, %v784, %v848
          %v881 = vsel %vm817, %v785, %v849
          %v882 = vsel %vm818, %v786, %v850
          %v883 = vsel %vm819, %v787, %v851
          %v884 = vsel %vm820, %v788, %v852
          %v885 = vsel %vm821, %v789, %v853
          %v886 = vpack.c.bf16 %v855, %v854
          %v887 = vpack.c.bf16 %v857, %v856
          %v888 = vpack.c.bf16 %v859, %v858
          %v889 = vpack.c.bf16 %v861, %v860
          %v890 = vpack.c.bf16 %v863, %v862
          %v891 = vpack.c.bf16 %v865, %v864
          %v892 = vpack.c.bf16 %v867, %v866
          %v893 = vpack.c.bf16 %v869, %v868
          %v894 = vpack.c.bf16 %v871, %v870
          %v895 = vpack.c.bf16 %v873, %v872
          %v896 = vpack.c.bf16 %v875, %v874
          %v897 = vpack.c.bf16 %v877, %v876
          %v898 = vpack.c.bf16 %v879, %v878
          %v899 = vpack.c.bf16 %v881, %v880
          %v900 = vpack.c.bf16 %v883, %v882
          %v901 = vpack.c.bf16 %v885, %v884
          %v918 = vunpack.c.l.b16 %v886
          %v919 = vunpack.c.h.b16 %v886
          %v920 = vunpack.c.l.b16 %v887
          %v921 = vunpack.c.h.b16 %v887
          %v922 = vunpack.c.l.b16 %v888
          %v923 = vunpack.c.h.b16 %v888
          %v924 = vunpack.c.l.b16 %v889
          %v925 = vunpack.c.h.b16 %v889
          %v926 = vunpack.c.l.b16 %v890
          %v927 = vunpack.c.h.b16 %v890
          %v928 = vunpack.c.l.b16 %v891
          %v929 = vunpack.c.h.b16 %v891
          %v930 = vunpack.c.l.b16 %v892
          %v931 = vunpack.c.h.b16 %v892
          %v932 = vunpack.c.l.b16 %v893
          %v933 = vunpack.c.h.b16 %v893
          %v934 = vunpack.c.l.b16 %v894
          %v935 = vunpack.c.h.b16 %v894
          %v936 = vunpack.c.l.b16 %v895
          %v937 = vunpack.c.h.b16 %v895
          %v938 = vunpack.c.l.b16 %v896
          %v939 = vunpack.c.h.b16 %v896
          %v940 = vunpack.c.l.b16 %v897
          %v941 = vunpack.c.h.b16 %v897
          %v942 = vunpack.c.l.b16 %v898
          %v943 = vunpack.c.h.b16 %v898
          %v944 = vunpack.c.l.b16 %v899
          %v945 = vunpack.c.h.b16 %v899
          %v946 = vunpack.c.l.b16 %v900
          %v947 = vunpack.c.h.b16 %v900
          %v948 = vunpack.c.l.b16 %v901
          %v949 = vunpack.c.h.b16 %v901
          %v950 = vpack.c.b16 %v918, %v918
          %v951 = vpack.c.b16 %v919, %v919
          %v952 = vpack.c.b16 %v920, %v920
          %v953 = vpack.c.b16 %v921, %v921
          %v954 = vpack.c.b16 %v922, %v922
          %v955 = vpack.c.b16 %v923, %v923
          %v956 = vpack.c.b16 %v924, %v924
          %v957 = vpack.c.b16 %v925, %v925
          %v958 = vpack.c.b16 %v926, %v926
          %v959 = vpack.c.b16 %v927, %v927
          %v960 = vpack.c.b16 %v928, %v928
          %v961 = vpack.c.b16 %v929, %v929
          %v962 = vpack.c.b16 %v930, %v930
          %v963 = vpack.c.b16 %v931, %v931
          %v964 = vpack.c.b16 %v932, %v932
          %v965 = vpack.c.b16 %v933, %v933
          %v966 = vpack.c.b16 %v934, %v934
          %v967 = vpack.c.b16 %v935, %v935
          %v968 = vpack.c.b16 %v936, %v936
          %v969 = vpack.c.b16 %v937, %v937
          %v970 = vpack.c.b16 %v938, %v938
          %v971 = vpack.c.b16 %v939, %v939
          %v972 = vpack.c.b16 %v940, %v940
          %v973 = vpack.c.b16 %v941, %v941
          %v974 = vpack.c.b16 %v942, %v942
          %v975 = vpack.c.b16 %v943, %v943
          %v976 = vpack.c.b16 %v944, %v944
          %v977 = vpack.c.b16 %v945, %v945
          %v978 = vpack.c.b16 %v946, %v946
          %v979 = vpack.c.b16 %v947, %v947
          %v980 = vpack.c.b16 %v948, %v948
          %v981 = vpack.c.b16 %v949, %v949
          %1014 = vst [vmem:[%s226] sm:$0xf] %v950
          %1015 = vst [vmem:[%s226 + $0x4] sm:$0xf] %v951
          %1016 = vst [vmem:[%s226 + $0x8] sm:$0xf] %v952
          %1017 = vst [vmem:[%s226 + $0xc] sm:$0xf] %v953
          %1018 = vst [vmem:[%s226 + $0x10] sm:$0xf] %v954
          %1019 = vst [vmem:[%s226 + $0x14] sm:$0xf] %v955
          %1020 = vst [vmem:[%s226 + $0x18] sm:$0xf] %v956
          %1021 = vst [vmem:[%s226 + $0x1c] sm:$0xf] %v957
          %1022 = vst [vmem:[%s226 + $0x20] sm:$0xf] %v958
          %1023 = vst [vmem:[%s226 + $0x24] sm:$0xf] %v959
          %1024 = vst [vmem:[%s226 + $0x28] sm:$0xf] %v960
          %1025 = vst [vmem:[%s226 + $0x2c] sm:$0xf] %v961
          %1026 = vst [vmem:[%s226 + $0x30] sm:$0xf] %v962
          %1027 = vst [vmem:[%s226 + $0x34] sm:$0xf] %v963
          %1028 = vst [vmem:[%s226 + $0x38] sm:$0xf] %v964
          %1029 = vst [vmem:[%s226 + $0x3c] sm:$0xf] %v965
          %1030 = vst [vmem:[%s226 + $0x40] sm:$0xf] %v966
          %1031 = vst [vmem:[%s226 + $0x44] sm:$0xf] %v967
          %1032 = vst [vmem:[%s226 + $0x48] sm:$0xf] %v968
          %1033 = vst [vmem:[%s226 + $0x4c] sm:$0xf] %v969
          %1034 = vst [vmem:[%s226 + $0x50] sm:$0xf] %v970
          %1035 = vst [vmem:[%s226 + $0x54] sm:$0xf] %v971
          %1036 = vst [vmem:[%s226 + $0x58] sm:$0xf] %v972
          %1037 = vst [vmem:[%s226 + $0x5c] sm:$0xf] %v973
          %1038 = vst [vmem:[%s226 + $0x60] sm:$0xf] %v974
          %1039 = vst [vmem:[%s226 + $0x64] sm:$0xf] %v975
          %1040 = vst [vmem:[%s226 + $0x68] sm:$0xf] %v976
          %1041 = vst [vmem:[%s226 + $0x6c] sm:$0xf] %v977
          %1042 = vst [vmem:[%s226 + $0x70] sm:$0xf] %v978
          %1043 = vst [vmem:[%s226 + $0x74] sm:$0xf] %v979
          %1044 = vst [vmem:[%s226 + $0x78] sm:$0xf] %v980
          %1045 = vst [vmem:[%s226 + $0x7c] sm:$0xf] %v981
        $region48: #{tpu_custom_call.1} parent=31 // pred_fallthru
          _
        %s1046 = sand.u32 %s116, 1
        %s1047 = scalar_lea.sflag [#allocation5], %s1046
        %s1048 = sand.u32 %s116, 1
        %s1049 = smul.addr %s1048, 128
        %s1050 = scalar_lea.vmem [#allocation8], %s1049
        // Predicated region
        $region49: #{tpu_custom_call.1} parent=31 // pred_check
          %p1051 = pneg %p126
        $region50: #{tpu_custom_call.1} parent=31 // pred_check_branch
          %1053 = sbr.rel (%p1051) target = $region52
        $region51: #{tpu_custom_call.1} parent=31 // pred_region
          %s1054 = smul.u32 32, %s25
          %s1056 = ssub.s32 2048, 2048
          %1057 = vsyncadd %s1047, %s1056
          %s1058 = smul.addr %s1054, 64
          %s1059 = scalar_lea.hbm %s3, %s1058
          %s1060 = sshll.u32 %s1050, 4
          %s1061 = int_to_ptr.vmem [resolvable:$true] %s1060
          %1066 = dma.vmem_to_hbm [thread:$0]  %s1061, 2048, %s1059, %s1047, 64, 64, 4
        $region52: #{tpu_custom_call.1} parent=31 // pred_fallthru
          _
      $region32: #{tpu_custom_call.1} parent=5 // pred_fallthru
        _
      %p1067 = scmp.le.s32.totalorder 2, %s16
      // Predicated region
      $region53: #{tpu_custom_call.1} parent=5 // pred_check
        %p1068 = pneg %p1067
      $region54: #{tpu_custom_call.1} parent=5 // pred_check_branch
        %1070 = sbr.rel (%p1068) target = $region56
      $region55: #{tpu_custom_call.1} parent=5 // pred_region
        %s1071 = ssub.s32 %s16, 2
        // Predicated region
        $region57: #{tpu_custom_call.1} parent=55 // pred_check
          %p1072 = pneg %p132
        $region58: #{tpu_custom_call.1} parent=55 // pred_check_branch
          %1074 = sbr.rel (%p1072) target = $region60
        $region59: #{tpu_custom_call.1} parent=55 // pred_region
          %s1075 = sand.u32 %s117, 1
          %s1076 = scalar_lea.sflag [#allocation5], %s1075
          %s1077 = sand.u32 %s117, 1
          %s1078 = smul.addr %s1077, 128
          %s1079 = scalar_lea.vmem [#allocation8], %s1078
          %1080 = dma.done %s1076, 2048
        $region60: #{tpu_custom_call.1} parent=55 // pred_fallthru
          _
      $region56: #{tpu_custom_call.1} parent=5 // pred_fallthru
        _
    $region6: #{tpu_custom_call.1} parent=1 // loop_footer
      %s20 = sadd.s32 1, %s16
    $region7: #{tpu_custom_call.1} parent=1 // loop_footer_branch
      %15 = sbr.rel target = $region3
    $region8: #{tpu_custom_call.1} parent=1 // loop_exit
      _
    %1081 = vsyncpa [#allocation4], 1
    %s1082 = scalar_lea.sflag [#allocation4], 1
    %1083 = vsyncpa %s1082, 1
    %1084 = vsyncpa [#allocation7], 1
    %1085 = vsyncpa [#allocation5], 1
    %s1086 = scalar_lea.sflag [#allocation5], 1
    %1087 = vsyncpa %s1086, 1

</llo_original>
